<compile_context>
chip_gen: v5e
topology: v5e:2x2
jax: 0.10.0
libtpu: 0.0.40
codegen_flags: <defaults>
</compile_context>

<pallas_src>
import functools

import jax
import jax.numpy as jnp
from jax.experimental import pallas as pl
from jax.experimental.pallas import tpu as pltpu

MARGIN = 1.0
EPS = 1e-6  # F.pairwise_distance default eps


def _triplet_loss_kernel(a_ref, p_ref, n_ref, out_ref, *, batch, block_rows,
                         margin):
    i = pl.program_id(0)

    @pl.when(i == 0)
    def _():
        out_ref[...] = jnp.zeros_like(out_ref)

    # Native-dtype subtract (bf16 VALU on v6e/v7x), single upcast per distance,
    # EPS added after the f32 upcast.
    dpos = (a_ref[...] - p_ref[...]).astype(jnp.float32) + EPS
    dneg = (a_ref[...] - n_ref[...]).astype(jnp.float32) + EPS

    dp = jnp.sqrt(jnp.sum(dpos * dpos, axis=-1, keepdims=True))  # (TB, 1)
    dn = jnp.sqrt(jnp.sum(dneg * dneg, axis=-1, keepdims=True))  # (TB, 1)

    losses = jnp.maximum(dp - dn + margin, 0.0)  # (TB, 1)

    # Mask padded rows of a ragged final tile (they'd otherwise add `margin`).
    row_id = i * block_rows + jax.lax.broadcasted_iota(
        jnp.int32, losses.shape, 0)
    losses = jnp.where(row_id < batch, losses, 0.0)

    # Accumulate the SUM; divide by the true batch size once at the end.
    out_ref[...] += jnp.sum(losses).reshape(1, 1)

    @pl.when(i == pl.num_programs(0) - 1)
    def _():
        out_ref[...] = out_ref[...] * (1.0 / batch)


def triplet_loss(anchor, positive, negative, *, margin=MARGIN,
                 block_rows=None):
    """anchor/positive/negative: (B, D) arrays. Returns scalar f32 loss."""
    B, D = anchor.shape
    itemsize = jnp.dtype(anchor.dtype).itemsize

    if block_rows is None:
        # Largest batch tile such that 3 inputs x 2 pipeline buffers stay well
        # inside scoped VMEM on every generation (v7x: 64 MiB physical).
        target_buf_bytes = 2 * 1024 * 1024          # ~2 MiB per input buffer
        block_rows = max(8, target_buf_bytes // max(D * itemsize, 1))
        block_rows = min(block_rows, 2048)
    if block_rows >= B:
        block_rows = B                              # single full-extent tile
    else:
        block_rows = max(8, (block_rows // 8) * 8)  # sublane-aligned tile

    grid = (pl.cdiv(B, block_rows),)

    kernel = functools.partial(
        _triplet_loss_kernel, batch=B, block_rows=block_rows, margin=margin)

    cost = pl.CostEstimate(
        flops=8 * B * D + 4 * B,            # subs, eps-adds, squares, reduces
        transcendentals=2 * B,              # two sqrt per row
        bytes_accessed=3 * B * D * itemsize + 4,
    )

    out = pl.pallas_call(
        kernel,
        out_shape=jax.ShapeDtypeStruct((1, 1), jnp.float32),
        grid_spec=pl.GridSpec(
            grid=grid,
            in_specs=[
                pl.BlockSpec((block_rows, D), lambda i: (i, 0)),
                pl.BlockSpec((block_rows, D), lambda i: (i, 0)),
                pl.BlockSpec((block_rows, D), lambda i: (i, 0)),
            ],
            out_specs=pl.BlockSpec((1, 1), lambda i: (0, 0)),
        ),
        compiler_params=pltpu.CompilerParams(
            dimension_semantics=("arbitrary",),     # reduction axis
            vmem_limit_bytes=32 * 1024 * 1024,
        ),
        cost_estimate=cost,
    )(anchor, positive, negative)
    return out[0, 0]


def triplet_loss_ref(anchor, positive, negative, margin=MARGIN):
    """Pure-JAX reference matching torch semantics."""
    a = anchor.astype(jnp.float32)
    p = positive.astype(jnp.float32)
    n = negative.astype(jnp.float32)
    dp = jnp.sqrt(jnp.sum((a - p + EPS) ** 2, axis=-1))
    dn = jnp.sqrt(jnp.sum((a - n + EPS) ** 2, axis=-1))
    return jnp.mean(jnp.maximum(dp - dn + margin, 0.0))


if __name__ == "__main__":
    key = jax.random.PRNGKey(0)

    # Case 1: small embedding batch (single tile path).
    k_a, k_p, k_n, key = jax.random.split(key, 4)
    B, D = 8, 32
    anchor = jax.random.normal(k_a, (B, D), dtype=jnp.float32)
    positive = jax.random.normal(k_p, (B, D), dtype=jnp.float32)
    negative = jax.random.normal(k_n, (B, D), dtype=jnp.float32)

    loss = jax.block_until_ready(triplet_loss(anchor, positive, negative))
    ref = jax.block_until_ready(triplet_loss_ref(anchor, positive, negative))
    assert jnp.allclose(loss, ref, rtol=1e-5, atol=1e-5), (loss, ref)

    # Case 2: exercise the tiled/accumulator path with a ragged final tile.
    k_a, k_p, k_n, key = jax.random.split(key, 4)
    B2, D2 = 20, 128
    a2 = jax.random.normal(k_a, (B2, D2), dtype=jnp.float32)
    p2 = jax.random.normal(k_p, (B2, D2), dtype=jnp.float32)
    n2 = jax.random.normal(k_n, (B2, D2), dtype=jnp.float32)

    loss2 = jax.block_until_ready(triplet_loss(a2, p2, n2, block_rows=8))
    ref2 = jax.block_until_ready(triplet_loss_ref(a2, p2, n2))
    assert jnp.allclose(loss2, ref2, rtol=1e-5, atol=1e-5), (loss2, ref2)

    print("KERNEL_OK")
</pallas_src>

<mosaic_0001>
module attributes {stable_mosaic.version = 11 : i64} {
  func.func @_triplet_loss_kernel(%arg0: i32, %arg1: memref<8x32xf32, #tpu.memory_space<vmem>>, %arg2: memref<8x32xf32, #tpu.memory_space<vmem>>, %arg3: memref<8x32xf32, #tpu.memory_space<vmem>>, %arg4: memref<1x1xf32, #tpu.memory_space<vmem>>) attributes {dimension_semantics = [#tpu.dimension_semantics<arbitrary>], iteration_bounds = array<i64: 1>, scalar_prefetch = 0 : i64, scratch_operands = 0 : i64, tpu.core_type = #tpu.core_type<tc>, window_params = [{transform_indices = @transform_0, window_bounds = array<i64: 8, 32>}, {transform_indices = @transform_1, window_bounds = array<i64: 8, 32>}, {transform_indices = @transform_2, window_bounds = array<i64: 8, 32>}, {pipeline_mode = #tpu.pipeline_mode<synchronous>, transform_indices = @transform_3, window_bounds = array<i64: 1, 1>}]} {
    %c0_i32 = arith.constant 0 : i32
    %0 = arith.cmpi eq, %arg0, %c0_i32 : i32
    %1 = arith.extui %0 : i1 to i32
    %c0_i32_0 = arith.constant 0 : i32
    %2 = arith.cmpi ne, %1, %c0_i32_0 : i32
    scf.if %2 {
      %cst_22 = arith.constant 0.000000e+00 : f32
      %45 = vector.broadcast %cst_22 : f32 to vector<1x1xf32>
      %c0_23 = arith.constant 0 : index
      %c0_24 = arith.constant 0 : index
      %46 = vector.load %arg4[%c0_23, %c0_24] : memref<1x1xf32, #tpu.memory_space<vmem>>, vector<1x1xf32>
      tpu.vector_store %arg4[%c0_23, %c0_24], %45 {strides = array<i32>} : memref<1x1xf32, #tpu.memory_space<vmem>>, vector<1x1xf32>,
    } else {
    }
    %c0 = arith.constant 0 : index
    %c0_1 = arith.constant 0 : index
    %3 = vector.load %arg1[%c0, %c0_1] : memref<8x32xf32, #tpu.memory_space<vmem>>, vector<8x32xf32>
    %c0_2 = arith.constant 0 : index
    %c0_3 = arith.constant 0 : index
    %4 = vector.load %arg2[%c0_2, %c0_3] : memref<8x32xf32, #tpu.memory_space<vmem>>, vector<8x32xf32>
    %5 = arith.subf %3, %4 : vector<8x32xf32>
    %cst = arith.constant 9.99999997E-7 : f32
    %6 = vector.broadcast %cst : f32 to vector<8x32xf32>
    %7 = arith.addf %5, %6 : vector<8x32xf32>
    %c0_4 = arith.constant 0 : index
    %c0_5 = arith.constant 0 : index
    %8 = vector.load %arg1[%c0_4, %c0_5] : memref<8x32xf32, #tpu.memory_space<vmem>>, vector<8x32xf32>
    %c0_6 = arith.constant 0 : index
    %c0_7 = arith.constant 0 : index
    %9 = vector.load %arg3[%c0_6, %c0_7] : memref<8x32xf32, #tpu.memory_space<vmem>>, vector<8x32xf32>
    %10 = arith.subf %8, %9 : vector<8x32xf32>
    %cst_8 = arith.constant 9.99999997E-7 : f32
    %11 = vector.broadcast %cst_8 : f32 to vector<8x32xf32>
    %12 = arith.addf %10, %11 : vector<8x32xf32>
    %13 = arith.mulf %7, %7 : vector<8x32xf32>
    %cst_9 = arith.constant dense<0.000000e+00> : vector<8xf32>
    %14 = vector.multi_reduction <add>, %13, %cst_9 [1] : vector<8x32xf32> to vector<8xf32>
    %15 = vector.shape_cast %14 : vector<8xf32> to vector<8x1xf32>
    %16 = math.sqrt %15 : vector<8x1xf32>
    %17 = arith.mulf %12, %12 : vector<8x32xf32>
    %cst_10 = arith.constant dense<0.000000e+00> : vector<8xf32>
    %18 = vector.multi_reduction <add>, %17, %cst_10 [1] : vector<8x32xf32> to vector<8xf32>
    %19 = vector.shape_cast %18 : vector<8xf32> to vector<8x1xf32>
    %20 = math.sqrt %19 : vector<8x1xf32>
    %21 = arith.subf %16, %20 : vector<8x1xf32>
    %cst_11 = arith.constant 1.000000e+00 : f32
    %22 = vector.broadcast %cst_11 : f32 to vector<8x1xf32>
    %23 = arith.addf %21, %22 : vector<8x1xf32>
    %cst_12 = arith.constant 0.000000e+00 : f32
    %24 = vector.broadcast %cst_12 : f32 to vector<8x1xf32>
    %25 = arith.maximumf %23, %24 : vector<8x1xf32>
    %c8_i32 = arith.constant 8 : i32
    %26 = arith.muli %arg0, %c8_i32 : i32
    %27 = tpu.iota {dimensions = array<i32: 0>} : vector<8x1xi32>
    %28 = vector.broadcast %26 : i32 to vector<8x1xi32>
    %29 = arith.addi %28, %27 : vector<8x1xi32>
    %c8_i32_13 = arith.constant 8 : i32
    %30 = vector.broadcast %c8_i32_13 : i32 to vector<8x1xi32>
    %31 = arith.cmpi slt, %29, %30 : vector<8x1xi32>
    %cst_14 = arith.constant 0.000000e+00 : f32
    %32 = vector.broadcast %cst_14 : f32 to vector<8x1xf32>
    %33 = arith.select %31, %25, %32 : vector<8x1xi1>, vector<8x1xf32>
    %c0_15 = arith.constant 0 : index
    %c0_16 = arith.constant 0 : index
    %34 = vector.load %arg4[%c0_15, %c0_16] : memref<1x1xf32, #tpu.memory_space<vmem>>, vector<1x1xf32>
    %35 = vector.shape_cast %33 : vector<8x1xf32> to vector<1x8x1xf32>
    %cst_17 = arith.constant dense<0.000000e+00> : vector<1xf32>
    %36 = vector.multi_reduction <add>, %35, %cst_17 [1, 2] : vector<1x8x1xf32> to vector<1xf32>
    %37 = vector.shape_cast %36 : vector<1xf32> to vector<1x1x1xf32>
    %38 = vector.extract %37[0, 0, 0] : f32 from vector<1x1x1xf32>
    %39 = vector.broadcast %38 : f32 to vector<1x1xf32>
    %40 = arith.addf %34, %39 : vector<1x1xf32>
    %c0_18 = arith.constant 0 : index
    %c0_19 = arith.constant 0 : index
    %41 = vector.load %arg4[%c0_18, %c0_19] : memref<1x1xf32, #tpu.memory_space<vmem>>, vector<1x1xf32>
    tpu.vector_store %arg4[%c0_18, %c0_19], %40 {strides = array<i32>} : memref<1x1xf32, #tpu.memory_space<vmem>>, vector<1x1xf32>,
    %c0_i32_20 = arith.constant 0 : i32
    %42 = arith.cmpi eq, %arg0, %c0_i32_20 : i32
    %43 = arith.extui %42 : i1 to i32
    %c0_i32_21 = arith.constant 0 : i32
    %44 = arith.cmpi ne, %43, %c0_i32_21 : i32
    scf.if %44 {
      %c0_22 = arith.constant 0 : index
      %c0_23 = arith.constant 0 : index
      %45 = vector.load %arg4[%c0_22, %c0_23] : memref<1x1xf32, #tpu.memory_space<vmem>>, vector<1x1xf32>
      %cst_24 = arith.constant 1.250000e-01 : f32
      %46 = vector.broadcast %cst_24 : f32 to vector<1x1xf32>
      %47 = arith.mulf %45, %46 : vector<1x1xf32>
      %c0_25 = arith.constant 0 : index
      %c0_26 = arith.constant 0 : index
      %48 = vector.load %arg4[%c0_25, %c0_26] : memref<1x1xf32, #tpu.memory_space<vmem>>, vector<1x1xf32>
      tpu.vector_store %arg4[%c0_25, %c0_26], %47 {strides = array<i32>} : memref<1x1xf32, #tpu.memory_space<vmem>>, vector<1x1xf32>,
    } else {
    }
    return
  }
  func.func @transform_0(%arg0: i32) -> (i32, i32) {
    %c0_i32 = arith.constant 0 : i32
    %c0_i32_0 = arith.constant 0 : i32
    return %arg0, %c0_i32 : i32, i32
  }
  func.func @transform_1(%arg0: i32) -> (i32, i32) {
    %c0_i32 = arith.constant 0 : i32
    %c0_i32_0 = arith.constant 0 : i32
    return %arg0, %c0_i32 : i32, i32
  }
  func.func @transform_2(%arg0: i32) -> (i32, i32) {
    %c0_i32 = arith.constant 0 : i32
    %c0_i32_0 = arith.constant 0 : i32
    return %arg0, %c0_i32 : i32, i32
  }
  func.func @transform_3(%arg0: i32) -> (i32, i32) {
    %c0_i32 = arith.constant 0 : i32
    %c0_i32_0 = arith.constant 0 : i32
    %c0_i32_1 = arith.constant 0 : i32
    return %c0_i32, %c0_i32_0 : i32, i32
  }
}

</mosaic_0001>

<llo_original>
// kernel: tpu_custom_call.1
$region0: #{tpu_custom_call.1}
  #allocation0 [shape = 'u32[]', space=smem, size = 0x4, offset = 0x4, fixed_abs, tag = 'smem constant byte address 0x4 - core index']
  #allocation1 [shape = 'u32[72,128]{1,0:T(1,128)}', space=vmem, size = 0x9000, scoped, tag = 'internal scratch']
  %s0 = inlined_call_operand.hbm [shape: f32[8,32], index: 0, kind: input, shape index: {}]
  %s1 = inlined_call_operand.hbm [shape: f32[8,32], index: 1, kind: input, shape index: {}]
  %s2 = inlined_call_operand.hbm [shape: f32[8,32], index: 2, kind: input, shape index: {}]
  %s3 = inlined_call_operand.hbm [shape: f32[1,1], index: 3, kind: output, shape index: {}]
  %s4 = sld [smem:[#allocation0]]
  $region42: #{tpu_custom_call.1} parent=0
    _
  %s6 = ssub.s32 1, %s4
  %s7 = scalar_select 0, %s6, %s4
  $region1: #{tpu_custom_call.1} parent=0
    #allocation2 [shape = 'u8[4096]{0}', space=vmem, size = 0x1000, scoped, tag = 'input window, operand 0, single buffered']
    #allocation3 [shape = 's32[1]{0}', space=sflag, size = 0x4, scoped, tag = 'scoped memory for tpu_custom_call.1']
    #allocation4 [shape = 's32[1]{0}', space=sflag, size = 0x4, scoped, tag = 'scoped memory for tpu_custom_call.1']
    #allocation5 [shape = 'u8[4096]{0}', space=vmem, size = 0x1000, scoped, tag = 'input window, operand 1, single buffered']
    #allocation6 [shape = 's32[1]{0}', space=sflag, size = 0x4, scoped, tag = 'scoped memory for tpu_custom_call.1']
    #allocation7 [shape = 'u8[4096]{0}', space=vmem, size = 0x1000, scoped, tag = 'input window, operand 2, single buffered']
    #allocation8 [shape = 'u8[512]{0}', space=vmem, size = 0x400, scoped, tag = 'output window, operand 0, single buffered']
    %8 = vsyncpa [#allocation3], 0
    %9 = vsyncpa [#allocation6], 0
    %10 = vsyncpa [#allocation4], 0
    // Predicated region
    $region2: #{tpu_custom_call.1} parent=1 // pred_check
      _
    $region3: #{tpu_custom_call.1} parent=1 // pred_check_branch
      %12 = sbr.rel (0) target = $region5
    $region4: #{tpu_custom_call.1} parent=1 // pred_region
      %14 = vsyncadd [#allocation3], 0
      %s16 = sshll.u32 %s0, 4
      %s17 = int_to_ptr.hbm [resolvable:$true] %s16
      %s18 = sshll.u32 [#allocation2], 4
      %s19 = int_to_ptr.vmem [resolvable:$true] %s18
      %21 = dma.hbm_to_vmem [thread:$0]  %s17, 128, %s19, [#allocation3]
    $region5: #{tpu_custom_call.1} parent=1 // pred_fallthru
      _
    // Predicated region
    $region6: #{tpu_custom_call.1} parent=1 // pred_check
      _
    $region7: #{tpu_custom_call.1} parent=1 // pred_check_branch
      %23 = sbr.rel (0) target = $region9
    $region8: #{tpu_custom_call.1} parent=1 // pred_region
      %25 = vsyncadd [#allocation6], 0
      %s27 = sshll.u32 %s1, 4
      %s28 = int_to_ptr.hbm [resolvable:$true] %s27
      %s29 = sshll.u32 [#allocation5], 4
      %s30 = int_to_ptr.vmem [resolvable:$true] %s29
      %32 = dma.hbm_to_vmem [thread:$0]  %s28, 128, %s30, [#allocation6]
    $region9: #{tpu_custom_call.1} parent=1 // pred_fallthru
      _
    // Predicated region
    $region10: #{tpu_custom_call.1} parent=1 // pred_check
      _
    $region11: #{tpu_custom_call.1} parent=1 // pred_check_branch
      %34 = sbr.rel (0) target = $region13
    $region12: #{tpu_custom_call.1} parent=1 // pred_region
      %36 = vsyncadd [#allocation6], 0
      %s38 = sshll.u32 %s2, 4
      %s39 = int_to_ptr.hbm [resolvable:$true] %s38
      %s40 = sshll.u32 [#allocation7], 4
      %s41 = int_to_ptr.vmem [resolvable:$true] %s40
      %43 = dma.hbm_to_vmem [thread:$0]  %s39, 128, %s41, [#allocation6]
    $region13: #{tpu_custom_call.1} parent=1 // pred_fallthru
      _
    // Predicated region
    $region14: #{tpu_custom_call.1} parent=1 // pred_check
      _
    $region15: #{tpu_custom_call.1} parent=1 // pred_check_branch
      %45 = sbr.rel (0) target = $region17
    $region16: #{tpu_custom_call.1} parent=1 // pred_region
      %47 = dma.done [#allocation3], 128
    $region17: #{tpu_custom_call.1} parent=1 // pred_fallthru
      _
    // Predicated region
    $region18: #{tpu_custom_call.1} parent=1 // pred_check
      _
    $region19: #{tpu_custom_call.1} parent=1 // pred_check_branch
      %49 = sbr.rel (0) target = $region21
    $region20: #{tpu_custom_call.1} parent=1 // pred_region
      %51 = dma.done [#allocation6], 128
    $region21: #{tpu_custom_call.1} parent=1 // pred_fallthru
      _
    // Predicated region
    $region22: #{tpu_custom_call.1} parent=1 // pred_check
      _
    $region23: #{tpu_custom_call.1} parent=1 // pred_check_branch
      %53 = sbr.rel (0) target = $region25
    $region24: #{tpu_custom_call.1} parent=1 // pred_region
      %55 = dma.done [#allocation6], 128
    $region25: #{tpu_custom_call.1} parent=1 // pred_fallthru
      _
    %p56 = scmp.eq.s32.totalorder 0, 0
    // Predicated region
    $region26: #{tpu_custom_call.1} parent=1 // pred_check
      %p57 = pneg %p56
    $region27: #{tpu_custom_call.1} parent=1 // pred_check_branch
      %59 = sbr.rel (%p57) target = $region29
    $region28: #{tpu_custom_call.1} parent=1 // pred_region
      %vm60 = vcmask 0
      %61 = vst.msk [vmem:[#allocation8] sm:$0x1] %vm60, 0.0
    $region29: #{tpu_custom_call.1} parent=1 // pred_fallthru
      _
    %v62 = vld [vmem:[#allocation2] sm:$0xff]
    %v63 = vld [vmem:[#allocation5] sm:$0xff]
    %v64 = vsub.f32 %v62, %v63
    %v65 = vadd.f32 %v64, 1e-06
    %v66 = vld [vmem:[#allocation7] sm:$0xff]
    %v67 = vsub.f32 %v62, %v66
    %v68 = vadd.f32 %v67, 1e-06
    %v69 = vmul.f32 %v65, %v65
    %vm70 = vcmask 261120
    %v71 = vsel %vm70, %v69, 0.0
    %72 = vadd.xlane.f32.xlu0 %v71
    %v73 = vpop.xlane.xlu0 %72
    %v74 = vrsqrt.pop %v73
    %v75 = vmul.f32 %v74, %v73
    %v76 = vmul.f32 %v75, %v74
    %v77 = vmul.f32 0.5, %v76
    %v78 = vsub.f32 1.5, %v77
    %v79 = vmul.f32 %v74, %v78
    %v80 = vmul.f32 %v73, %v79
    %vm81 = vcmp.eq.f32.partialorder %v73, inf
    %v82 = vsel %vm81, %v73, %v80
    %vm83 = vcmp.eq.f32.partialorder %v73, 0.0
    %v84 = vand.u32 %v73, 2147483648
    %v85 = vsel %vm83, %v84, %v82
    %v86 = vmul.f32 %v68, %v68
    %v87 = vsel %vm70, %v86, 0.0
    %88 = vadd.xlane.f32.xlu0 %v87
    %v89 = vpop.xlane.xlu0 %88
    %v90 = vrsqrt.pop %v89
    %v91 = vmul.f32 %v90, %v89
    %v92 = vmul.f32 %v91, %v90
    %v93 = vmul.f32 0.5, %v92
    %v94 = vsub.f32 1.5, %v93
    %v95 = vmul.f32 %v90, %v94
    %v96 = vmul.f32 %v89, %v95
    %vm97 = vcmp.eq.f32.partialorder %v89, inf
    %v98 = vsel %vm97, %v89, %v96
    %vm99 = vcmp.eq.f32.partialorder %v89, 0.0
    %v100 = vand.u32 %v89, 2147483648
    %v101 = vsel %vm99, %v100, %v98
    %v102 = vsub.f32 %v85, %v101
    %v103 = vadd.f32 %v102, 1.0
    %v104 = vmax.f32 %v103, 0.0
    %s105 = smul.u32 0, 8
    %v106 = vlaneseq
    %v107 = vshrl.u32 %v106, 7
    %v108 = vstv %s105
    %v109 = vadd.s32 %v108, %v107
    %vm110 = vcmp.lt.s32.totalorder %v109, 8
    %v111 = vsel %vm110, %v104, 0.0
    %v112 = vld [vmem:[#allocation8] sm:$0x1]
    %vm113 = vcmask 7168
    %v114 = vsel %vm113, %v111, 0.0
    %115 = vadd.xlane.f32.xlu0 %v114
    %v116 = vpop.xlane.xlu0 %115
    %v117 = vrot.slane %v116, 4
    %v118 = vadd.f32 %v116, %v117
    %v119 = vrot.slane %v118, 2
    %v120 = vadd.f32 %v118, %v119
    %v121 = vrot.slane %v120, 1
    %v122 = vadd.f32 %v120, %v121
    %s123 = vtos %v122
    %v124 = vstv %s123
    %v125 = vadd.f32 %v112, %v124
    %vm126 = vcmask 0
    %127 = vst.msk [vmem:[#allocation8] sm:$0x1] %vm126, %v125
    // Predicated region
    $region30: #{tpu_custom_call.1} parent=1 // pred_check
      %p128 = pneg %p56
    $region31: #{tpu_custom_call.1} parent=1 // pred_check_branch
      %130 = sbr.rel (%p128) target = $region33
    $region32: #{tpu_custom_call.1} parent=1 // pred_region
      %v131 = vld [vmem:[#allocation8] sm:$0x1]
      %v132 = vmul.f32 %v131, 0.125
      %133 = vst.msk [vmem:[#allocation8] sm:$0x1] %vm126, %v132
    $region33: #{tpu_custom_call.1} parent=1 // pred_fallthru
      _
    // Predicated region
    $region34: #{tpu_custom_call.1} parent=1 // pred_check
      _
    $region35: #{tpu_custom_call.1} parent=1 // pred_check_branch
      %135 = sbr.rel (0) target = $region37
    $region36: #{tpu_custom_call.1} parent=1 // pred_region
      %137 = vsyncadd [#allocation4], 0
      %s139 = sshll.u32 [#allocation8], 4
      %s140 = int_to_ptr.vmem [resolvable:$true] %s139
      %s141 = sshll.u32 %s3, 4
      %s142 = int_to_ptr.hbm [resolvable:$true] %s141
      %144 = dma.vmem_to_hbm [thread:$0]  %s140, 16, %s142, [#allocation4]
    $region37: #{tpu_custom_call.1} parent=1 // pred_fallthru
      _
    // Predicated region
    $region38: #{tpu_custom_call.1} parent=1 // pred_check
      _
    $region39: #{tpu_custom_call.1} parent=1 // pred_check_branch
      %146 = sbr.rel (0) target = $region41
    $region40: #{tpu_custom_call.1} parent=1 // pred_region
      %148 = dma.done [#allocation4], 16
    $region41: #{tpu_custom_call.1} parent=1 // pred_fallthru
      _
    %149 = vsyncpa [#allocation3], 1
    %150 = vsyncpa [#allocation6], 1
    %151 = vsyncpa [#allocation4], 1

</llo_original>
